<compile_context>
chip_gen: v7x
topology: tpu7x:2x2x1
jax: 0.10.0
libtpu: 0.0.40
codegen_flags: <defaults>
</compile_context>

<pallas_src>
import jax
import jax.numpy as jnp
from jax.experimental import pallas as pl
from jax.experimental.pallas import tpu as pltpu


def _identity_kernel(x_ref, o_ref):
    # Pure pass-through: the original forward performs no computation.
    o_ref[...] = x_ref[...]


_LANE = 128        # TPU lane width
_TILE_ROWS = 512   # 512 x 128 x 4B = 256 KiB per buffer -> fits every chip's VMEM


def pallas_identity(x: jax.Array) -> jax.Array:
    """Identity copy as a Pallas TPU kernel (demonstration only).

    No padding, no extra HBM passes: the input is reshaped (metadata-only for
    a contiguous array) to a lane-dense 2D view when possible, otherwise a
    single full-shape block is used (exempt from the (8,128) rule).
    """
    n = x.size
    if n % _LANE == 0:
        x2d = x.reshape(n // _LANE, _LANE)      # lane-dense: unmasked vst
    else:
        x2d = x.reshape(1, n)                   # full-shape block, no tiling rule

    rows, cols = x2d.shape

    if cols == _LANE and rows % _TILE_ROWS == 0 and rows // _TILE_ROWS > 1:
        # Large input: grid over rows, both TensorCores share the work (v7x).
        out2d = pl.pallas_call(
            _identity_kernel,
            out_shape=jax.ShapeDtypeStruct(x2d.shape, x2d.dtype),
            grid=(rows // _TILE_ROWS,),
            in_specs=[pl.BlockSpec((_TILE_ROWS, cols), lambda i: (i, 0))],
            out_specs=pl.BlockSpec((_TILE_ROWS, cols), lambda i: (i, 0)),
            input_output_aliases={0: 0},
            compiler_params=pltpu.CompilerParams(
                dimension_semantics=("parallel",)),
        )(x2d)
    else:
        # Small input: one full-shape block (exempt from (8,128) divisibility).
        out2d = pl.pallas_call(
            _identity_kernel,
            out_shape=jax.ShapeDtypeStruct(x2d.shape, x2d.dtype),
            in_specs=[pl.BlockSpec(x2d.shape, lambda: (0, 0))],
            out_specs=pl.BlockSpec(x2d.shape, lambda: (0, 0)),
            input_output_aliases={0: 0},
        )(x2d)

    return out2d.reshape(x.shape)


def my_model_forward(x: jax.Array):
    """Faithful port of My_model.forward: empty body, returns None.

    No pallas_call (or any other work) is executed on the model path -- zero
    work is the correct and fastest implementation of an empty forward().
    """
    # TODO(synk): PyTorch forward body is empty and returns None; there is no
    # computation to express as a kernel.
    return None


if __name__ == "__main__":
    key = jax.random.PRNGKey(0)
    x = jax.random.normal(key, (2, 4, 16, 16), dtype=jnp.float32)

    # Run the demonstration Pallas kernel once and block on it.
    y = pallas_identity(x)
    jax.block_until_ready(y)
    assert y.shape == x.shape and bool(jnp.allclose(y, x))

    # Model forward semantics: returns None, exactly like the PyTorch module,
    # and launches no kernel.
    out = my_model_forward(x)
    assert out is None

    print("KERNEL_OK")
</pallas_src>

<mosaic_0001>
module attributes {stable_mosaic.version = 11 : i64} {
  func.func @_identity_kernel(%arg0: memref<16x128xf32, #tpu.memory_space<vmem>>, %arg1: memref<16x128xf32, #tpu.memory_space<vmem>>) attributes {dimension_semantics = [], scalar_prefetch = 0 : i64, scratch_operands = 0 : i64, tpu.core_type = #tpu.core_type<tc>} {
    %c0 = arith.constant 0 : index
    %c0_0 = arith.constant 0 : index
    %0 = vector.load %arg0[%c0, %c0_0] : memref<16x128xf32, #tpu.memory_space<vmem>>, vector<16x128xf32>
    %c0_1 = arith.constant 0 : index
    %c0_2 = arith.constant 0 : index
    %1 = vector.load %arg1[%c0_1, %c0_2] : memref<16x128xf32, #tpu.memory_space<vmem>>, vector<16x128xf32>
    tpu.vector_store %arg1[%c0_1, %c0_2], %0 {strides = array<i32>} : memref<16x128xf32, #tpu.memory_space<vmem>>, vector<16x128xf32>,
    return
  }
}

</mosaic_0001>

<llo_original>
// kernel: tpu_custom_call.1
$region0: #{tpu_custom_call.1}
  #allocation0 [shape = 'u32[]', space=smem, size = 0x4, offset = 0x4, fixed_abs, tag = 'smem constant byte address 0x4 - core index']
  #allocation1 [shape = 'u32[144,128]{1,0:T(1,128)}', space=vmem, size = 0x12000, scoped, tag = 'internal scratch']
  %s0 = inlined_call_operand.hbm [shape: f32[16,128], index: 0, kind: input, shape index: {}, may-alias: {0,1}]
  %s1 = inlined_call_operand.hbm [shape: f32[16,128], index: 1, kind: output, shape index: {}, may-alias: {0,1}]
  %s2 = sld [smem:[#allocation0]]
  $region18: #{tpu_custom_call.1} parent=0
    _
  %s4 = ssub.s32 1, %s2
  %s5 = scalar_select 0, %s4, %s2
  $region1: #{tpu_custom_call.1} parent=0
    #allocation2 [shape = 'u8[8192]{0}', space=vmem, size = 0x2000, scoped, tag = 'input window, operand 0, single buffered']
    #allocation3 [shape = 's32[1]{0}', space=sflag, size = 0x4, scoped, tag = 'scoped memory for tpu_custom_call.1']
    #allocation4 [shape = 's32[1]{0}', space=sflag, size = 0x4, scoped, tag = 'scoped memory for tpu_custom_call.1']
    #allocation5 [shape = 'u8[8192]{0}', space=vmem, size = 0x2000, scoped, tag = 'output window, operand 0, single buffered']
    %6 = vsyncpa [#allocation3], 0
    %7 = vsyncpa [#allocation4], 0
    // Predicated region
    $region2: #{tpu_custom_call.1} parent=1 // pred_check
      _
    $region3: #{tpu_custom_call.1} parent=1 // pred_check_branch
      %9 = sbr.rel (0) target = $region5
    $region4: #{tpu_custom_call.1} parent=1 // pred_region
      %s11 = ssub.s32 256, 256
      %12 = vsyncadd [#allocation3], %s11
      %s13 = sshll.u32 [#allocation2], 4
      %s14 = int_to_ptr.vmem [resolvable:$true] %s13
      %19 = dma.hbm_to_vmem [thread:$0]  %s0, 256, %s14, [#allocation3], 128, 128, 8
    $region5: #{tpu_custom_call.1} parent=1 // pred_fallthru
      _
    // Predicated region
    $region6: #{tpu_custom_call.1} parent=1 // pred_check
      _
    $region7: #{tpu_custom_call.1} parent=1 // pred_check_branch
      %21 = sbr.rel (0) target = $region9
    $region8: #{tpu_custom_call.1} parent=1 // pred_region
      %22 = dma.done [#allocation3], 256
    $region9: #{tpu_custom_call.1} parent=1 // pred_fallthru
      _
    %v23 = vld [vmem:[#allocation2] sm:$0xff]
    %v24 = vld [vmem:[#allocation2 + $0x8] sm:$0xff]
    %25 = vst [vmem:[#allocation5] sm:$0xff] %v23
    %26 = vst [vmem:[#allocation5 + $0x8] sm:$0xff] %v24
    // Predicated region
    $region10: #{tpu_custom_call.1} parent=1 // pred_check
      _
    $region11: #{tpu_custom_call.1} parent=1 // pred_check_branch
      %28 = sbr.rel (0) target = $region13
    $region12: #{tpu_custom_call.1} parent=1 // pred_region
      %s30 = ssub.s32 256, 256
      %31 = vsyncadd [#allocation4], %s30
      %s32 = sshll.u32 [#allocation5], 4
      %s33 = int_to_ptr.vmem [resolvable:$true] %s32
      %38 = dma.vmem_to_hbm [thread:$0]  %s33, 256, %s1, [#allocation4], 128, 128, 8
    $region13: #{tpu_custom_call.1} parent=1 // pred_fallthru
      _
    // Predicated region
    $region14: #{tpu_custom_call.1} parent=1 // pred_check
      _
    $region15: #{tpu_custom_call.1} parent=1 // pred_check_branch
      %40 = sbr.rel (0) target = $region17
    $region16: #{tpu_custom_call.1} parent=1 // pred_region
      %41 = dma.done [#allocation4], 256
    $region17: #{tpu_custom_call.1} parent=1 // pred_fallthru
      _
    %42 = vsyncpa [#allocation3], 1
    %43 = vsyncpa [#allocation4], 1

</llo_original>
